<compile_context>
chip_gen: v7x
topology: tpu7x:2x2x1
jax: 0.10.0
libtpu: 0.0.40
codegen_flags: <defaults>
</compile_context>

<pallas_src>
import functools

import jax
import jax.numpy as jnp
from jax import lax
from jax.experimental import pallas as pl
from jax.experimental.pallas import tpu as pltpu


def _classifier_kernel(x_ref,            # [TB, F]  (f32 or bf16; BN folded into w1/b1)
                       w1_ref, b1_ref,   # [F, H] bf16, [1, H] f32
                       w2_ref,           # [1, H] f32  (row form of the [H,1] weight)
                       b2_ref,           # (1, 1) f32 in SMEM (scalar)
                       o_ref,            # [TB, 1] f32
                       *, out_range, out_shift):
    # Linear 1 (+ folded BatchNorm) + ReLU.  bf16 MXU operands, f32 accumulation.
    h = jnp.dot(x_ref[...].astype(jnp.bfloat16), w1_ref[...],
                preferred_element_type=jnp.float32) + b1_ref[...]
    h = jnp.maximum(h, 0.0)

    # Linear 2 has a single output column -> keep it off the MXU:
    # VPU multiply + XLU lane reduce, all in f32; bias is an SMEM scalar.
    y = jnp.sum(h * w2_ref[...], axis=-1, keepdims=True) + b2_ref[0, 0]

    # sigmoid -> fixed affine output scaling.  exp and approx reciprocal both go to
    # the (otherwise idle) EUP slot; everything stays f32 (v5e-safe).
    y = pl.reciprocal(1.0 + jnp.exp(-y), approx=True)
    o_ref[...] = (y * out_range + out_shift).astype(o_ref.dtype)
    # NOTE: output stays (tb, 1) batch-major.  A lane-dense (1, tb) layout would need
    # an in-kernel sublane->lane transpose; writeback here is ~1 KB per step, so the
    # extra XLU pass is not worth it unless the output ever widens.


def _pick_batch_tile(B, block_b):
    """Sublane-aligned batch tile.

    Preferences (from the perf review):
      * as large as possible up to block_b (>=512-row tiles reach ~85% of HBM BW),
      * keep >= 2 grid steps when the batch allows (v7x: 2 TensorCores),
      * multiples of 256 first (v6e/v7x MXU M side), then 128 (v5e MXU),
      * divide the batch when possible (no ragged tail, no pad copy).
    """
    Bp8 = ((B + 7) // 8) * 8
    if B < 8:
        return B                      # single block == full dim (legal block shape)
    if Bp8 < 256:
        return Bp8                    # single step; too small to split usefully
    if Bp8 == 256:
        return 128                    # 2 steps of 128 -> both v7x cores get work
    cap = min(block_b, Bp8 // 2)      # keep >= 2 grid steps
    cap = (cap // 8) * 8
    for align in (256, 128):
        t = (cap // align) * align
        while t >= align:
            if Bp8 % t == 0:
                return t
            t -= align
    return max(cap, 8)                # ragged tail: Pallas masks the last partial block


@functools.partial(jax.jit, static_argnames=("block_b", "out_range", "out_shift"))
def classifier_forward(x, params, *, block_b=512, out_range=6.0, out_shift=-3.0):
    """Fused forward. x: [B, fusion_dim] (f32 or bf16) -> [B, 1] float32."""
    B, F = x.shape
    H = params["w1"].shape[1]
    eps = 1e-5

    # --- Fold eval-mode BatchNorm1d into Linear 1 (done once per call, in XLA). ---
    scale = params["bn_gamma"] * lax.rsqrt(params["bn_running_var"] + eps)   # [1, F]
    shift = params["bn_beta"] - params["bn_running_mean"] * scale            # [1, F]
    w1f = (scale.reshape(F, 1) * params["w1"]).astype(jnp.bfloat16)          # [F, H]
    b1f = (shift @ params["w1"] + params["b1"]).astype(jnp.float32)          # [1, H]
    w2r = params["w2"].reshape(1, H).astype(jnp.float32)                     # [1, H] row
    b2 = params["b2"].reshape(1, 1).astype(jnp.float32)                      # SMEM scalar

    tb = _pick_batch_tile(B, block_b)
    nb = pl.cdiv(B, tb)

    kernel = functools.partial(_classifier_kernel,
                               out_range=out_range, out_shift=out_shift)

    cost = pl.CostEstimate(
        flops=2 * B * F * H + 2 * B * H,
        transcendentals=2 * B,                      # exp + approx reciprocal per row
        bytes_accessed=(x.size * x.dtype.itemsize + w1f.size * 2 + b1f.size * 4
                        + w2r.size * 4 + b2.size * 4 + B * 4),
    )

    out = pl.pallas_call(
        kernel,
        out_shape=jax.ShapeDtypeStruct((B, 1), jnp.float32),
        grid=(nb,),
        in_specs=[
            pl.BlockSpec((tb, F), lambda i: (i, 0)),     # x: streamed over batch
            pl.BlockSpec((F, H), lambda i: (0, 0)),      # weights/biases: VMEM-resident
            pl.BlockSpec((1, H), lambda i: (0, 0)),
            pl.BlockSpec((1, H), lambda i: (0, 0)),
            pl.BlockSpec(memory_space=pltpu.MemorySpace.SMEM),   # b2 scalar in SMEM
        ],
        out_specs=pl.BlockSpec((tb, 1), lambda i: (i, 0)),
        compiler_params=pltpu.CompilerParams(
            dimension_semantics=("parallel",),           # shard batch across TCs (v7x)
            vmem_limit_bytes=32 * 1024 * 1024,           # plenty for 512-row f32 tiles
        ),
        cost_estimate=cost,
    )(x, w1f, b1f, w2r, b2)

    return out


def init_params(key, fusion_dim, clf_hidden_dim):
    """Deterministic, PyTorch-Linear-like init. Weights stored as [in, out]."""
    ks = jax.random.split(key, 7)

    def linear(kw, kb, fan_in, fan_out):
        bound = 1.0 / jnp.sqrt(fan_in)
        w = jax.random.uniform(kw, (fan_in, fan_out), jnp.float32, -bound, bound)
        b = jax.random.uniform(kb, (1, fan_out), jnp.float32, -bound, bound)
        return w, b

    w1, b1 = linear(ks[0], ks[1], fusion_dim, clf_hidden_dim)
    w2, b2 = linear(ks[2], ks[3], clf_hidden_dim, 1)

    # BatchNorm1d eval-mode parameters / running stats (nonzero to exercise the math).
    bn_gamma = 1.0 + 0.1 * jax.random.uniform(ks[4], (1, fusion_dim), jnp.float32)
    bn_beta = jnp.zeros((1, fusion_dim), jnp.float32)
    bn_rmean = 0.1 * jax.random.normal(ks[5], (1, fusion_dim), jnp.float32)
    bn_rvar = 1.0 + 0.1 * jax.random.uniform(ks[6], (1, fusion_dim), jnp.float32)

    return dict(
        w1=w1, b1=b1, w2=w2, b2=b2,
        bn_gamma=bn_gamma, bn_beta=bn_beta,
        bn_running_mean=bn_rmean, bn_running_var=bn_rvar,
    )


def _reference_forward(x, p, out_range=6.0, out_shift=-3.0):
    """Pure-JAX f32 reference (eval-mode), for correctness check."""
    eps = 1e-5
    xn = (x - p["bn_running_mean"]) / jnp.sqrt(p["bn_running_var"] + eps)
    xn = xn * p["bn_gamma"] + p["bn_beta"]
    h = jnp.maximum(xn @ p["w1"] + p["b1"], 0.0)
    y = jax.nn.sigmoid(h @ p["w2"] + p["b2"])
    return y * out_range + out_shift


if __name__ == "__main__":
    # Lane-dense, forward-consistent shapes: args.fusion_dim = 128,
    # args.clf_hidden_dim = 128, batch = 256 (2 grid steps of 128 -> both v7x cores).
    B, FUSION, HIDDEN = 256, 128, 128

    key = jax.random.PRNGKey(0)
    kx, kp = jax.random.split(key)
    x = jax.random.normal(kx, (B, FUSION), jnp.float32)
    params = init_params(kp, FUSION, HIDDEN)

    out = classifier_forward(x, params)
    out = jax.block_until_ready(out)

    ref = _reference_forward(x, params)
    assert out.shape == (B, 1)
    # bf16 matmul operands (f32 accumulation) + approx reciprocal -> relaxed tolerance.
    assert jnp.allclose(out, ref, atol=2e-2, rtol=2e-2), "mismatch vs reference"

    print("KERNEL_OK")
</pallas_src>

<mosaic_0001>
module attributes {stable_mosaic.version = 11 : i64} {
  func.func @_classifier_kernel(%arg0: i32, %arg1: memref<128x128xf32, #tpu.memory_space<vmem>>, %arg2: memref<128x128xbf16, #tpu.memory_space<vmem>>, %arg3: memref<1x128xf32, #tpu.memory_space<vmem>>, %arg4: memref<1x128xf32, #tpu.memory_space<vmem>>, %arg5: memref<1x1xf32, #tpu.memory_space<smem>>, %arg6: memref<128x1xf32, #tpu.memory_space<vmem>>) attributes {dimension_semantics = [#tpu.dimension_semantics<parallel>], iteration_bounds = array<i64: 2>, scalar_prefetch = 0 : i64, scratch_operands = 0 : i64, tpu.core_type = #tpu.core_type<tc>, window_params = [{transform_indices = @transform_0, window_bounds = array<i64: 128, 128>}, {pipeline_mode = #tpu.pipeline_mode<synchronous>, transform_indices = @transform_1, window_bounds = array<i64: 128, 128>}, {pipeline_mode = #tpu.pipeline_mode<synchronous>, transform_indices = @transform_2, window_bounds = array<i64: 1, 128>}, {pipeline_mode = #tpu.pipeline_mode<synchronous>, transform_indices = @transform_3, window_bounds = array<i64: 1, 128>}, {transform_indices = @transform_4, window_bounds = array<i64: 1, 1>}, {transform_indices = @transform_5, window_bounds = array<i64: 128, 1>}]} {
    %c0 = arith.constant 0 : index
    %c0_0 = arith.constant 0 : index
    %0 = vector.load %arg1[%c0, %c0_0] : memref<128x128xf32, #tpu.memory_space<vmem>>, vector<128x128xf32>
    %1 = arith.truncf %0 : vector<128x128xf32> to vector<128x128xbf16>
    %c0_1 = arith.constant 0 : index
    %c0_2 = arith.constant 0 : index
    %2 = vector.load %arg2[%c0_1, %c0_2] : memref<128x128xbf16, #tpu.memory_space<vmem>>, vector<128x128xbf16>
    %cst = arith.constant dense<0.000000e+00> : vector<128x128xf32>
    %3 = tpu.matmul %1, %2, %cst {dimension_numbers = #tpu.dot_dimension_numbers<[1], [0], [0], [1], [0, 0, 1, 1], [], []>} : vector<128x128xbf16>, vector<128x128xbf16>, vector<128x128xf32> -> vector<128x128xf32>
    %c0_3 = arith.constant 0 : index
    %c0_4 = arith.constant 0 : index
    %4 = vector.load %arg3[%c0_3, %c0_4] : memref<1x128xf32, #tpu.memory_space<vmem>>, vector<1x128xf32>
    %5 = vector.broadcast %4 : vector<1x128xf32> to vector<128x128xf32>
    %6 = arith.addf %3, %5 : vector<128x128xf32>
    %cst_5 = arith.constant 0.000000e+00 : f32
    %7 = vector.broadcast %cst_5 : f32 to vector<128x128xf32>
    %8 = arith.maximumf %6, %7 : vector<128x128xf32>
    %c0_6 = arith.constant 0 : index
    %c0_7 = arith.constant 0 : index
    %9 = vector.load %arg4[%c0_6, %c0_7] : memref<1x128xf32, #tpu.memory_space<vmem>>, vector<1x128xf32>
    %10 = vector.broadcast %9 : vector<1x128xf32> to vector<128x128xf32>
    %11 = arith.mulf %8, %10 : vector<128x128xf32>
    %cst_8 = arith.constant dense<0.000000e+00> : vector<128xf32>
    %12 = vector.multi_reduction <add>, %11, %cst_8 [1] : vector<128x128xf32> to vector<128xf32>
    %13 = vector.shape_cast %12 : vector<128xf32> to vector<128x1xf32>
    %c0_9 = arith.constant 0 : index
    %c0_10 = arith.constant 0 : index
    %14 = memref.load %arg5[%c0_9, %c0_10] : memref<1x1xf32, #tpu.memory_space<smem>>
    %15 = vector.broadcast %14 : f32 to vector<128x1xf32>
    %16 = arith.addf %13, %15 : vector<128x1xf32>
    %cst_11 = arith.constant 0.000000e+00 : f32
    %17 = vector.broadcast %cst_11 : f32 to vector<128x1xf32>
    %18 = arith.subf %17, %16 : vector<128x1xf32>
    %19 = math.exp %18 : vector<128x1xf32>
    %cst_12 = arith.constant 1.000000e+00 : f32
    %20 = vector.broadcast %cst_12 : f32 to vector<128x1xf32>
    %21 = arith.addf %20, %19 : vector<128x1xf32>
    %22 = tpu.reciprocal %21 {approx = true} : vector<128x1xf32> -> vector<128x1xf32>
    %cst_13 = arith.constant 6.000000e+00 : f32
    %23 = vector.broadcast %cst_13 : f32 to vector<128x1xf32>
    %24 = arith.mulf %22, %23 : vector<128x1xf32>
    %cst_14 = arith.constant -3.000000e+00 : f32
    %25 = vector.broadcast %cst_14 : f32 to vector<128x1xf32>
    %26 = arith.addf %24, %25 : vector<128x1xf32>
    %c0_15 = arith.constant 0 : index
    %c0_16 = arith.constant 0 : index
    %27 = vector.load %arg6[%c0_15, %c0_16] : memref<128x1xf32, #tpu.memory_space<vmem>>, vector<128x1xf32>
    tpu.vector_store %arg6[%c0_15, %c0_16], %26 {strides = array<i32>} : memref<128x1xf32, #tpu.memory_space<vmem>>, vector<128x1xf32>,
    return
  }
  func.func @transform_0(%arg0: i32) -> (i32, i32) {
    %c0_i32 = arith.constant 0 : i32
    %c0_i32_0 = arith.constant 0 : i32
    return %arg0, %c0_i32 : i32, i32
  }
  func.func @transform_1(%arg0: i32) -> (i32, i32) {
    %c0_i32 = arith.constant 0 : i32
    %c0_i32_0 = arith.constant 0 : i32
    %c0_i32_1 = arith.constant 0 : i32
    return %c0_i32, %c0_i32_0 : i32, i32
  }
  func.func @transform_2(%arg0: i32) -> (i32, i32) {
    %c0_i32 = arith.constant 0 : i32
    %c0_i32_0 = arith.constant 0 : i32
    %c0_i32_1 = arith.constant 0 : i32
    return %c0_i32, %c0_i32_0 : i32, i32
  }
  func.func @transform_3(%arg0: i32) -> (i32, i32) {
    %c0_i32 = arith.constant 0 : i32
    %c0_i32_0 = arith.constant 0 : i32
    %c0_i32_1 = arith.constant 0 : i32
    return %c0_i32, %c0_i32_0 : i32, i32
  }
  func.func @transform_4(%arg0: i32) -> (i32, i32) {
    %c0_i32 = arith.constant 0 : i32
    %c0_i32_0 = arith.constant 0 : i32
    %c0_i32_1 = arith.constant 0 : i32
    return %c0_i32, %c0_i32_0 : i32, i32
  }
  func.func @transform_5(%arg0: i32) -> (i32, i32) {
    %c0_i32 = arith.constant 0 : i32
    %c0_i32_0 = arith.constant 0 : i32
    return %arg0, %c0_i32 : i32, i32
  }
}

</mosaic_0001>

<llo_original>
// kernel: classifier_forward.1
$region0: #{classifier_forward.1}
  #allocation0 [shape = 'u32[]', space=smem, size = 0x4, offset = 0x4, fixed_abs, tag = 'smem constant byte address 0x4 - core index']
  #allocation1 [shape = 'u32[144,128]{1,0:T(1,128)}', space=vmem, size = 0x12000, scoped, tag = 'internal scratch']
  #allocation2 [shape = 'f32[1,1]{1,0:T(1,128)S(6)}', space=smem, size = 0x200, scoped, tag = 'scoped memory for classifier_forward.1']
  %s0 = inlined_call_operand.hbm [shape: f32[256,128], index: 0, kind: input, shape index: {}]
  %s1 = inlined_call_operand.vmem [shape: bf16[128,128], index: 1, kind: input, shape index: {}]
  %s2 = inlined_call_operand.vmem [shape: f32[1,128], index: 2, kind: input, shape index: {}]
  %s3 = inlined_call_operand.vmem [shape: f32[1,128], index: 3, kind: input, shape index: {}]
  %s4 = inlined_call_operand.<no memory space> [shape: f32[1,1], index: 4, kind: input, shape index: {}]
  %s5 = inlined_call_operand.vmem [shape: f32[256,1], index: 5, kind: output, shape index: {}]
  %s6 = sld [smem:[#allocation0]]
  $region57: #{classifier_forward.1} parent=0
    _
  %s8 = ssub.s32 1, %s6
  %s9 = scalar_select 0, %s8, %s6
  %10 = sst [smem:[#allocation2]] %s4
  $region1: #{classifier_forward.1} parent=0
    #allocation3 [shape = 'u8[131072]{0}', space=vmem, size = 0x20000, scoped, tag = 'input window, operand 0']
    #allocation4 [shape = 's32[2]{0}', space=sflag, size = 0x8, scoped, tag = 'scoped memory for classifier_forward.1']
    %11 = vsyncpa [#allocation4], 0
    %s12 = scalar_lea.sflag [#allocation4], 1
    %13 = vsyncpa %s12, 0
    loop: start=0, step=1, limit=4
    $region2: #{classifier_forward.1} parent=1 // loop_pre_header
      _
    $region3: #{classifier_forward.1} parent=1 // loop_header
      %s15 = sphi 0, %s19
      %p16 = scmp.ge.s32.totalorder %s15, 4
      %s25 = sphi 0, %s27
      %s28 = sphi 0, %s25
      %s29 = sphi 0, %s28
      %s45 = sphi 0, %s29
      %s49 = sphi 0, %s49
      %s51 = sphi 0, %s49
      %s52 = sphi 0, %s51
      %s66 = sphi 0, %s52
      %s70 = sphi 0, %s70
      %s72 = sphi 0, %s70
      %s73 = sphi 0, %s72
      %s87 = sphi 0, %s73
      %s91 = sphi 0, %s91
      %s93 = sphi 0, %s91
      %s94 = sphi 0, %s93
      %s108 = sphi 0, %s94
      %s112 = sphi 0, %s112
      %s114 = sphi 0, %s112
      %s115 = sphi 0, %s114
      %s129 = sphi 0, %s115
      %s135 = sphi 0, %s137
      %s138 = sphi 0, %s135
      %s139 = sphi 0, %s138
      %s155 = sphi 0, %s139
    $region4: #{classifier_forward.1} parent=1 // loop_header_branch
      %18 = sbr.rel (%p16) target = $region8
    $region5: #{classifier_forward.1} parent=1 // loop_body
      %s20 = ssub.s32 %s15, 1
      %s21 = ssub.s32 %s15, 2
      %s22 = sadd.s32 %s15, 1
      %s23 = ssub.s32 %s15, %s22
      %p24 = scmp.eq.s32.totalorder %s23, 0
      %s26 = sadd.s32 %s25, 1
      %s27 = scalar_select %p24, %s25, %s26
      %p30 = pneg %p24
      %p31 = scmp.eq.s32.totalorder %s15, 1
      %p32 = por %p30, %p31
      %p33 = scmp.ne.s32.totalorder %s25, %s28
      %p34 = scmp.eq.s32.totalorder %s15, 0
      %p35 = por %p33, %p34
      %p36 = scmp.ne.s32.totalorder %s25, %s28
      %p37 = scmp.eq.s32.totalorder %s20, 1
      %p38 = por %p36, %p37
      %p39 = scmp.ne.s32.totalorder %s28, %s29
      %p40 = scmp.eq.s32.totalorder %s20, 0
      %p41 = por %p39, %p40
      %p42 = scmp.ne.s32.totalorder %s28, %s29
      %p43 = scmp.eq.s32.totalorder %s21, 1
      %p44 = por %p42, %p43
      %p46 = scmp.ne.s32.totalorder %s29, %s45
      %p47 = scmp.eq.s32.totalorder %s21, 0
      %p48 = por %p46, %p47
      %s50 = sadd.s32 %s49, 1
      %p53 = scmp.eq.s32.totalorder %s15, 1
      %p54 = scmp.ne.s32.totalorder %s49, %s51
      %p55 = scmp.eq.s32.totalorder %s15, 0
      %p56 = por %p54, %p55
      %p57 = scmp.ne.s32.totalorder %s49, %s51
      %p58 = scmp.eq.s32.totalorder %s20, 1
      %p59 = por %p57, %p58
      %p60 = scmp.ne.s32.totalorder %s51, %s52
      %p61 = scmp.eq.s32.totalorder %s20, 0
      %p62 = por %p60, %p61
      %p63 = scmp.ne.s32.totalorder %s51, %s52
      %p64 = scmp.eq.s32.totalorder %s21, 1
      %p65 = por %p63, %p64
      %p67 = scmp.ne.s32.totalorder %s52, %s66
      %p68 = scmp.eq.s32.totalorder %s21, 0
      %p69 = por %p67, %p68
      %s71 = sadd.s32 %s70, 1
      %p74 = scmp.eq.s32.totalorder %s15, 1
      %p75 = scmp.ne.s32.totalorder %s70, %s72
      %p76 = scmp.eq.s32.totalorder %s15, 0
      %p77 = por %p75, %p76
      %p78 = scmp.ne.s32.totalorder %s70, %s72
      %p79 = scmp.eq.s32.totalorder %s20, 1
      %p80 = por %p78, %p79
      %p81 = scmp.ne.s32.totalorder %s72, %s73
      %p82 = scmp.eq.s32.totalorder %s20, 0
      %p83 = por %p81, %p82
      %p84 = scmp.ne.s32.totalorder %s72, %s73
      %p85 = scmp.eq.s32.totalorder %s21, 1
      %p86 = por %p84, %p85
      %p88 = scmp.ne.s32.totalorder %s73, %s87
      %p89 = scmp.eq.s32.totalorder %s21, 0
      %p90 = por %p88, %p89
      %s92 = sadd.s32 %s91, 1
      %p95 = scmp.eq.s32.totalorder %s15, 1
      %p96 = scmp.ne.s32.totalorder %s91, %s93
      %p97 = scmp.eq.s32.totalorder %s15, 0
      %p98 = por %p96, %p97
      %p99 = scmp.ne.s32.totalorder %s91, %s93
      %p100 = scmp.eq.s32.totalorder %s20, 1
      %p101 = por %p99, %p100
      %p102 = scmp.ne.s32.totalorder %s93, %s94
      %p103 = scmp.eq.s32.totalorder %s20, 0
      %p104 = por %p102, %p103
      %p105 = scmp.ne.s32.totalorder %s93, %s94
      %p106 = scmp.eq.s32.totalorder %s21, 1
      %p107 = por %p105, %p106
      %p109 = scmp.ne.s32.totalorder %s94, %s108
      %p110 = scmp.eq.s32.totalorder %s21, 0
      %p111 = por %p109, %p110
      %s113 = sadd.s32 %s112, 1
      %p116 = scmp.eq.s32.totalorder %s15, 1
      %p117 = scmp.ne.s32.totalorder %s112, %s114
      %p118 = scmp.eq.s32.totalorder %s15, 0
      %p119 = por %p117, %p118
      %p120 = scmp.ne.s32.totalorder %s112, %s114
      %p121 = scmp.eq.s32.totalorder %s20, 1
      %p122 = por %p120, %p121
      %p123 = scmp.ne.s32.totalorder %s114, %s115
      %p124 = scmp.eq.s32.totalorder %s20, 0
      %p125 = por %p123, %p124
      %p126 = scmp.ne.s32.totalorder %s114, %s115
      %p127 = scmp.eq.s32.totalorder %s21, 1
      %p128 = por %p126, %p127
      %p130 = scmp.ne.s32.totalorder %s115, %s129
      %p131 = scmp.eq.s32.totalorder %s21, 0
      %p132 = por %p130, %p131
      %s133 = ssub.s32 %s15, %s22
      %p134 = scmp.eq.s32.totalorder %s133, 0
      %s136 = sadd.s32 %s135, 1
      %s137 = scalar_select %p134, %s135, %s136
      %p140 = pneg %p134
      %p141 = scmp.eq.s32.totalorder %s15, 1
      %p142 = por %p140, %p141
      %p143 = scmp.ne.s32.totalorder %s135, %s138
      %p144 = scmp.eq.s32.totalorder %s15, 0
      %p145 = por %p143, %p144
      %p146 = scmp.ne.s32.totalorder %s135, %s138
      %p147 = scmp.eq.s32.totalorder %s20, 1
      %p148 = por %p146, %p147
      %p149 = scmp.ne.s32.totalorder %s138, %s139
      %p150 = scmp.eq.s32.totalorder %s20, 0
      %p151 = por %p149, %p150
      %p152 = scmp.ne.s32.totalorder %s138, %s139
      %p153 = scmp.eq.s32.totalorder %s21, 1
      %p154 = por %p152, %p153
      %p156 = scmp.ne.s32.totalorder %s139, %s155
      %p157 = scmp.eq.s32.totalorder %s21, 0
      %p158 = por %p156, %p157
      %p159 = scmp.le.s32.totalorder 1, %s15
      %p160 = scmp.lt.s32.totalorder %s15, 3
      %p161 = pnand %p159, %p160
      %p162 = pneg %p161
      // Predicated region
      $region9: #{classifier_forward.1} parent=5 // pred_check
        _
      $region10: #{classifier_forward.1} parent=5 // pred_check_branch
        %164 = sbr.rel (%p161) target = $region12
      $region11: #{classifier_forward.1} parent=5 // pred_region
        %s165 = ssub.s32 %s15, 1
        // Predicated region
        $region13: #{classifier_forward.1} parent=11 // pred_check
          %p166 = pneg %p62
        $region14: #{classifier_forward.1} parent=11 // pred_check_branch
          %168 = sbr.rel (%p166) target = $region16
        $region15: #{classifier_forward.1} parent=11 // pred_region
          _
        $region16: #{classifier_forward.1} parent=11 // pred_fallthru
          _
        // Predicated region
        $region17: #{classifier_forward.1} parent=11 // pred_check
          %p169 = pneg %p83
        $region18: #{classifier_forward.1} parent=11 // pred_check_branch
          %171 = sbr.rel (%p169) target = $region20
        $region19: #{classifier_forward.1} parent=11 // pred_region
          _
        $region20: #{classifier_forward.1} parent=11 // pred_fallthru
          _
        // Predicated region
        $region21: #{classifier_forward.1} parent=11 // pred_check
          %p172 = pneg %p104
        $region22: #{classifier_forward.1} parent=11 // pred_check_branch
          %174 = sbr.rel (%p172) target = $region24
        $region23: #{classifier_forward.1} parent=11 // pred_region
          _
        $region24: #{classifier_forward.1} parent=11 // pred_fallthru
          _
        // Predicated region
        $region25: #{classifier_forward.1} parent=11 // pred_check
          %p175 = pneg %p125
        $region26: #{classifier_forward.1} parent=11 // pred_check_branch
          %177 = sbr.rel (%p175) target = $region28
        $region27: #{classifier_forward.1} parent=11 // pred_region
          _
        $region28: #{classifier_forward.1} parent=11 // pred_fallthru
          _
      $region12: #{classifier_forward.1} parent=5 // pred_fallthru
        _
      %p178 = scmp.lt.s32.totalorder %s15, 2
      // Predicated region
      $region29: #{classifier_forward.1} parent=5 // pred_check
        %p179 = pneg %p178
      $region30: #{classifier_forward.1} parent=5 // pred_check_branch
        %181 = sbr.rel (%p179) target = $region32
      $region31: #{classifier_forward.1} parent=5 // pred_region
        // Predicated region
        $region33: #{classifier_forward.1} parent=31 // pred_check
          %p182 = pneg %p35
        $region34: #{classifier_forward.1} parent=31 // pred_check_branch
          %184 = sbr.rel (%p182) target = $region36
        $region35: #{classifier_forward.1} parent=31 // pred_region
          %s185 = sand.u32 %s25, 1
          %s186 = scalar_lea.sflag [#allocation4], %s185
          %s187 = sand.u32 %s25, 1
          %s188 = smul.addr %s187, 128
          %s189 = scalar_lea.vmem [#allocation3], %s188
          %s190 = smul.u32 16, %s15
          %s192 = ssub.s32 2048, 2048
          %193 = vsyncadd %s186, %s192
          %s194 = smul.addr %s190, 128
          %s195 = scalar_lea.hbm %s0, %s194
          %s196 = sshll.u32 %s189, 4
          %s197 = int_to_ptr.vmem [resolvable:$true] %s196
          %202 = dma.hbm_to_vmem [thread:$0]  %s195, 2048, %s197, %s186, 128, 128, 8
        $region36: #{classifier_forward.1} parent=31 // pred_fallthru
          _
      $region32: #{classifier_forward.1} parent=5 // pred_fallthru
        _
      %p203 = scmp.le.s32.totalorder 1, %s15
      %p204 = scmp.lt.s32.totalorder %s15, 3
      %p205 = pnand %p203, %p204
      %p206 = pneg %p205
      // Predicated region
      $region37: #{classifier_forward.1} parent=5 // pred_check
        _
      $region38: #{classifier_forward.1} parent=5 // pred_check_branch
        %208 = sbr.rel (%p205) target = $region40
      $region39: #{classifier_forward.1} parent=5 // pred_region
        %s209 = ssub.s32 %s15, 1
        %s210 = sand.u32 %s28, 1
        %s211 = scalar_lea.sflag [#allocation4], %s210
        %s212 = sand.u32 %s28, 1
        %s213 = smul.addr %s212, 128
        %s214 = scalar_lea.vmem [#allocation3], %s213
        // Predicated region
        $region41: #{classifier_forward.1} parent=39 // pred_check
          %p215 = pneg %p41
        $region42: #{classifier_forward.1} parent=39 // pred_check_branch
          %217 = sbr.rel (%p215) target = $region44
        $region43: #{classifier_forward.1} parent=39 // pred_region
          %218 = dma.done %s211, 2048
        $region44: #{classifier_forward.1} parent=39 // pred_fallthru
          _
        %s219 = sand.u32 %s28, 1
        %s220 = scalar_lea.sflag [#allocation4], %s219
        %s221 = sand.u32 %s28, 1
        %s222 = smul.addr %s221, 128
        %s223 = scalar_lea.vmem [#allocation3], %s222
        %p224 = pneg %p41
        %p225 = pneg %p38
        %p226 = pneg %p62
        %p227 = pneg %p59
        %p228 = pneg %p83
        %p229 = pneg %p80
        %p230 = pneg %p104
        %p231 = pneg %p101
        %p232 = pneg %p125
        %p233 = pneg %p122
        %p234 = pneg %p151
        %p235 = pneg %p148
        %s236 = smul.u32 16, %s20
        %p237 = scmp.lt.s32.totalorder %s236, 31
        %s238 = scalar_select %p237, %s236, 31
        %s239 = smul.addr %s238, 8
        %s240 = scalar_lea.vmem %s5, %s239
        %s241 = smul.u32 16, %s20
        %s242 = smul.u32 16, %s20
        %p243 = scmp.lt.s32.totalorder %s242, 31
        %s244 = scalar_select %p243, %s242, 31
        %s245 = smul.addr %s244, 8
        %s246 = scalar_lea.vmem %s5, %s245
        %s247 = smul.u32 16, %s20
        %v249 = vld [vmem:[%s214] sm:$0xff]
        %v250 = vld [vmem:[%s214 + $0x8] sm:$0xff]
        %v251 = vld [vmem:[%s214 + $0x10] sm:$0xff]
        %v252 = vld [vmem:[%s214 + $0x18] sm:$0xff]
        %v253 = vld [vmem:[%s214 + $0x20] sm:$0xff]
        %v254 = vld [vmem:[%s214 + $0x28] sm:$0xff]
        %v255 = vld [vmem:[%s214 + $0x30] sm:$0xff]
        %v256 = vld [vmem:[%s214 + $0x38] sm:$0xff]
        %v257 = vld [vmem:[%s214 + $0x40] sm:$0xff]
        %v258 = vld [vmem:[%s214 + $0x48] sm:$0xff]
        %v259 = vld [vmem:[%s214 + $0x50] sm:$0xff]
        %v260 = vld [vmem:[%s214 + $0x58] sm:$0xff]
        %v261 = vld [vmem:[%s214 + $0x60] sm:$0xff]
        %v262 = vld [vmem:[%s214 + $0x68] sm:$0xff]
        %v263 = vld [vmem:[%s214 + $0x70] sm:$0xff]
        %v264 = vld [vmem:[%s214 + $0x78] sm:$0xff]
        %v265 = vpack.c.bf16 %v250, %v249
        %v266 = vpack.c.bf16 %v252, %v251
        %v267 = vpack.c.bf16 %v254, %v253
        %v268 = vpack.c.bf16 %v256, %v255
        %v269 = vpack.c.bf16 %v258, %v257
        %v270 = vpack.c.bf16 %v260, %v259
        %v271 = vpack.c.bf16 %v262, %v261
        %v272 = vpack.c.bf16 %v264, %v263
        %v273 = vld [vmem:[%s1] sm:$0xf]
        %v274 = vld [vmem:[%s1 + $0x4] sm:$0xf]
        %v275 = vld [vmem:[%s1 + $0x8] sm:$0xf]
        %v276 = vld [vmem:[%s1 + $0xc] sm:$0xf]
        %v277 = vld [vmem:[%s1 + $0x10] sm:$0xf]
        %v278 = vld [vmem:[%s1 + $0x14] sm:$0xf]
        %v279 = vld [vmem:[%s1 + $0x18] sm:$0xf]
        %v280 = vld [vmem:[%s1 + $0x1c] sm:$0xf]
        %v281 = vld [vmem:[%s1 + $0x20] sm:$0xf]
        %v282 = vld [vmem:[%s1 + $0x24] sm:$0xf]
        %v283 = vld [vmem:[%s1 + $0x28] sm:$0xf]
        %v284 = vld [vmem:[%s1 + $0x2c] sm:$0xf]
        %v285 = vld [vmem:[%s1 + $0x30] sm:$0xf]
        %v286 = vld [vmem:[%s1 + $0x34] sm:$0xf]
        %v287 = vld [vmem:[%s1 + $0x38] sm:$0xf]
        %v288 = vld [vmem:[%s1 + $0x3c] sm:$0xf]
        %v289 = vld [vmem:[%s2] sm:$0x1]
        %v291 = vlaneseq
        %v292 = vshrl.u32 %v291, 7
        %v293 = vsub.s32 0, %v292
        %v294 = vrot.slane %v289, %v293
        %v312 = vunpack.c.l.b16 %v273
        %v313 = vunpack.c.l.b16 %v274
        %v314 = vunpack.c.l.b16 %v275
        %v315 = vunpack.c.l.b16 %v276
        %v316 = vunpack.c.l.b16 %v277
        %v317 = vunpack.c.l.b16 %v278
        %v318 = vunpack.c.l.b16 %v279
        %v319 = vunpack.c.l.b16 %v280
        %v320 = vunpack.c.l.b16 %v281
        %v321 = vunpack.c.l.b16 %v282
        %v322 = vunpack.c.l.b16 %v283
        %v323 = vunpack.c.l.b16 %v284
        %v324 = vunpack.c.l.b16 %v285
        %v325 = vunpack.c.l.b16 %v286
        %v326 = vunpack.c.l.b16 %v287
        %v327 = vunpack.c.l.b16 %v288
        %v328 = vpack.c.b16 %v313, %v312
        %v329 = vpack.c.b16 %v315, %v314
        %v330 = vpack.c.b16 %v317, %v316
        %v331 = vpack.c.b16 %v319, %v318
        %v332 = vpack.c.b16 %v321, %v320
        %v333 = vpack.c.b16 %v323, %v322
        %v334 = vpack.c.b16 %v325, %v324
        %v335 = vpack.c.b16 %v327, %v326
        %344 = vmatprep.subr.bf16.mxu0 0
        %345 = vmatpush1.bf16.msra.mxu0 %v328
        %346 = vmatprep.subr.bf16.mxu0 0
        %347 = vmatpush1.bf16.msra.mxu0 %v329
        %348 = vmatprep.subr.bf16.mxu0 0
        %349 = vmatpush1.bf16.msra.mxu0 %v330
        %350 = vmatprep.subr.bf16.mxu0 0
        %351 = vmatpush1.bf16.msra.mxu0 %v331
        %352 = vmatprep.subr.bf16.mxu0 0
        %353 = vmatpush1.bf16.msra.mxu0 %v332
        %354 = vmatprep.subr.bf16.mxu0 0
        %355 = vmatpush1.bf16.msra.mxu0 %v333
        %356 = vmatprep.subr.bf16.mxu0 0
        %357 = vmatpush1.bf16.msra.mxu0 %v334
        %358 = vmatprep.subr.bf16.mxu0 0
        %359 = vmatpush1.bf16.msra.mxu0 %v335
        %360 = vmatprep.subr.bf16.mxu0 0
        %361 = vmatpush1.bf16.msra.mxu0 0
        %362 = vmatprep.subr.bf16.mxu0 0
        %363 = vmatpush1.bf16.msra.mxu0 0
        %364 = vmatprep.subr.bf16.mxu0 0
        %365 = vmatpush1.bf16.msra.mxu0 0
        %366 = vmatprep.subr.bf16.mxu0 0
        %367 = vmatpush1.bf16.msra.mxu0 0
        %368 = vmatprep.subr.bf16.mxu0 0
        %369 = vmatpush1.bf16.msra.mxu0 0
        %370 = vmatprep.subr.bf16.mxu0 0
        %371 = vmatpush1.bf16.msra.mxu0 0
        %372 = vmatprep.subr.bf16.mxu0 0
        %373 = vmatpush1.bf16.msra.mxu0 0
        %374 = vmatprep.subr.bf16.mxu0 0
        %375 = vmatpush1.bf16.msra.mxu0 0
        %376 = vmatprep.mubr.bf16.mxu0 0
        %377 = vmatmul.mubr.bf16.gmra.mrb[0].mxu0 %v265
        %v378 = vpop.f32.mrb[0].mxu0
        %v379 = vadd.f32 %v294, %v378
        %v380 = vpop.f32.mrb[0].mxu0
        %v381 = vpop.f32.mrb[0].mxu0
        %v382 = vadd.f32 %v294, %v381
        %v383 = vpop.f32.mrb[0].mxu0
        %384 = vmatprep.mubr.bf16.mxu0 0
        %385 = vmatmul.mubr.bf16.gmra.mrb[0].mxu0 %v266
        %v386 = vpop.f32.mrb[0].mxu0
        %v387 = vadd.f32 %v294, %v386
        %v388 = vpop.f32.mrb[0].mxu0
        %v389 = vpop.f32.mrb[0].mxu0
        %v390 = vadd.f32 %v294, %v389
        %v391 = vpop.f32.mrb[0].mxu0
        %392 = vmatprep.mubr.bf16.mxu0 0
        %393 = vmatmul.mubr.bf16.gmra.mrb[0].mxu0 %v267
        %v394 = vpop.f32.mrb[0].mxu0
        %v395 = vadd.f32 %v294, %v394
        %v396 = vpop.f32.mrb[0].mxu0
        %v397 = vpop.f32.mrb[0].mxu0
        %v398 = vadd.f32 %v294, %v397
        %v399 = vpop.f32.mrb[0].mxu0
        %400 = vmatprep.mubr.bf16.mxu0 0
        %401 = vmatmul.mubr.bf16.gmra.mrb[0].mxu0 %v268
        %v402 = vpop.f32.mrb[0].mxu0
        %v403 = vadd.f32 %v294, %v402
        %v404 = vpop.f32.mrb[0].mxu0
        %v405 = vpop.f32.mrb[0].mxu0
        %v406 = vadd.f32 %v294, %v405
        %v407 = vpop.f32.mrb[0].mxu0
        %408 = vmatprep.mubr.bf16.mxu0 0
        %409 = vmatmul.mubr.bf16.gmra.mrb[0].mxu0 %v269
        %v410 = vpop.f32.mrb[0].mxu0
        %v411 = vadd.f32 %v294, %v410
        %v412 = vpop.f32.mrb[0].mxu0
        %v413 = vpop.f32.mrb[0].mxu0
        %v414 = vadd.f32 %v294, %v413
        %v415 = vpop.f32.mrb[0].mxu0
        %416 = vmatprep.mubr.bf16.mxu0 0
        %417 = vmatmul.mubr.bf16.gmra.mrb[0].mxu0 %v270
        %v418 = vpop.f32.mrb[0].mxu0
        %v419 = vadd.f32 %v294, %v418
        %v420 = vpop.f32.mrb[0].mxu0
        %v421 = vpop.f32.mrb[0].mxu0
        %v422 = vadd.f32 %v294, %v421
        %v423 = vpop.f32.mrb[0].mxu0
        %424 = vmatprep.mubr.bf16.mxu0 0
        %425 = vmatmul.mubr.bf16.gmra.mrb[0].mxu0 %v271
        %v426 = vpop.f32.mrb[0].mxu0
        %v427 = vadd.f32 %v294, %v426
        %v428 = vpop.f32.mrb[0].mxu0
        %v429 = vpop.f32.mrb[0].mxu0
        %v430 = vadd.f32 %v294, %v429
        %v431 = vpop.f32.mrb[0].mxu0
        %432 = vmatprep.mubr.bf16.mxu0 0
        %433 = vmatmul.mubr.bf16.gmra.mrb[0].mxu0 %v272
        %v434 = vpop.f32.mrb[0].mxu0
        %v435 = vadd.f32 %v294, %v434
        %v436 = vpop.f32.mrb[0].mxu0
        %v437 = vpop.f32.mrb[0].mxu0
        %v438 = vadd.f32 %v294, %v437
        %v439 = vpop.f32.mrb[0].mxu0
        %440 = vdwg.mxu0
        %v441 = vmax.f32 %v379, 0.0
        %v442 = vmax.f32 %v382, 0.0
        %v443 = vmax.f32 %v387, 0.0
        %v444 = vmax.f32 %v390, 0.0
        %v445 = vmax.f32 %v395, 0.0
        %v446 = vmax.f32 %v398, 0.0
        %v447 = vmax.f32 %v403, 0.0
        %v448 = vmax.f32 %v406, 0.0
        %v449 = vmax.f32 %v411, 0.0
        %v450 = vmax.f32 %v414, 0.0
        %v451 = vmax.f32 %v419, 0.0
        %v452 = vmax.f32 %v422, 0.0
        %v453 = vmax.f32 %v427, 0.0
        %v454 = vmax.f32 %v430, 0.0
        %v455 = vmax.f32 %v435, 0.0
        %v456 = vmax.f32 %v438, 0.0
        %v457 = vld [vmem:[%s3] sm:$0x1]
        %v459 = vlaneseq
        %v460 = vshrl.u32 %v459, 7
        %v461 = vsub.s32 0, %v460
        %v462 = vrot.slane %v457, %v461
        %v464 = vmul.f32 %v441, %v462
        %v465 = vmul.f32 %v442, %v462
        %v466 = vmul.f32 %v443, %v462
        %v467 = vmul.f32 %v444, %v462
        %v468 = vmul.f32 %v445, %v462
        %v469 = vmul.f32 %v446, %v462
        %v470 = vmul.f32 %v447, %v462
        %v471 = vmul.f32 %v448, %v462
        %v472 = vmul.f32 %v449, %v462
        %v473 = vmul.f32 %v450, %v462
        %v474 = vmul.f32 %v451, %v462
        %v475 = vmul.f32 %v452, %v462
        %v476 = vmul.f32 %v453, %v462
        %v477 = vmul.f32 %v454, %v462
        %v478 = vmul.f32 %v455, %v462
        %v479 = vmul.f32 %v456, %v462
        %480 = vadd.xlane.f32.xlu0 %v464
        %v481 = vpop.xlane.xlu0 %480
        %482 = vadd.xlane.f32.xlu0 %v465
        %v483 = vpop.xlane.xlu0 %482
        %484 = vadd.xlane.f32.xlu0 %v466
        %v485 = vpop.xlane.xlu0 %484
        %486 = vadd.xlane.f32.xlu0 %v467
        %v487 = vpop.xlane.xlu0 %486
        %488 = vadd.xlane.f32.xlu0 %v468
        %v489 = vpop.xlane.xlu0 %488
        %490 = vadd.xlane.f32.xlu0 %v469
        %v491 = vpop.xlane.xlu0 %490
        %492 = vadd.xlane.f32.xlu0 %v470
        %v493 = vpop.xlane.xlu0 %492
        %494 = vadd.xlane.f32.xlu0 %v471
        %v495 = vpop.xlane.xlu0 %494
        %496 = vadd.xlane.f32.xlu0 %v472
        %v497 = vpop.xlane.xlu0 %496
        %498 = vadd.xlane.f32.xlu0 %v473
        %v499 = vpop.xlane.xlu0 %498
        %500 = vadd.xlane.f32.xlu0 %v474
        %v501 = vpop.xlane.xlu0 %500
        %502 = vadd.xlane.f32.xlu0 %v475
        %v503 = vpop.xlane.xlu0 %502
        %504 = vadd.xlane.f32.xlu0 %v476
        %v505 = vpop.xlane.xlu0 %504
        %506 = vadd.xlane.f32.xlu0 %v477
        %v507 = vpop.xlane.xlu0 %506
        %508 = vadd.xlane.f32.xlu0 %v478
        %v509 = vpop.xlane.xlu0 %508
        %510 = vadd.xlane.f32.xlu0 %v479
        %v511 = vpop.xlane.xlu0 %510
        %s512 = sld [smem:[#allocation2]]
        %v513 = vstv %s512
        %v514 = vadd.f32 %v481, %v513
        %v515 = vadd.f32 %v483, %v513
        %v516 = vadd.f32 %v485, %v513
        %v517 = vadd.f32 %v487, %v513
        %v518 = vadd.f32 %v489, %v513
        %v519 = vadd.f32 %v491, %v513
        %v520 = vadd.f32 %v493, %v513
        %v521 = vadd.f32 %v495, %v513
        %v522 = vadd.f32 %v497, %v513
        %v523 = vadd.f32 %v499, %v513
        %v524 = vadd.f32 %v501, %v513
        %v525 = vadd.f32 %v503, %v513
        %v526 = vadd.f32 %v505, %v513
        %v527 = vadd.f32 %v507, %v513
        %v528 = vadd.f32 %v509, %v513
        %v529 = vadd.f32 %v511, %v513
        %v530 = vsub.f32 0.0, %v514
        %v531 = vsub.f32 0.0, %v515
        %v532 = vsub.f32 0.0, %v516
        %v533 = vsub.f32 0.0, %v517
        %v534 = vsub.f32 0.0, %v518
        %v535 = vsub.f32 0.0, %v519
        %v536 = vsub.f32 0.0, %v520
        %v537 = vsub.f32 0.0, %v521
        %v538 = vsub.f32 0.0, %v522
        %v539 = vsub.f32 0.0, %v523
        %v540 = vsub.f32 0.0, %v524
        %v541 = vsub.f32 0.0, %v525
        %v542 = vsub.f32 0.0, %v526
        %v543 = vsub.f32 0.0, %v527
        %v544 = vsub.f32 0.0, %v528
        %v545 = vsub.f32 0.0, %v529
        %v546 = vmul.f32 %v530, 1.442695
        %v547 = vpow.pop %v546
        %v548 = vmul.f32 %v531, 1.442695
        %v549 = vpow.pop %v548
        %v550 = vmul.f32 %v532, 1.442695
        %v551 = vpow.pop %v550
        %v552 = vmul.f32 %v533, 1.442695
        %v553 = vpow.pop %v552
        %v554 = vmul.f32 %v534, 1.442695
        %v555 = vpow.pop %v554
        %v556 = vmul.f32 %v535, 1.442695
        %v557 = vpow.pop %v556
        %v558 = vmul.f32 %v536, 1.442695
        %v559 = vpow.pop %v558
        %v560 = vmul.f32 %v537, 1.442695
        %v561 = vpow.pop %v560
        %v562 = vmul.f32 %v538, 1.442695
        %v563 = vpow.pop %v562
        %v564 = vmul.f32 %v539, 1.442695
        %v565 = vpow.pop %v564
        %v566 = vmul.f32 %v540, 1.442695
        %v567 = vpow.pop %v566
        %v568 = vmul.f32 %v541, 1.442695
        %v569 = vpow.pop %v568
        %v570 = vmul.f32 %v542, 1.442695
        %v571 = vpow.pop %v570
        %v572 = vmul.f32 %v543, 1.442695
        %v573 = vpow.pop %v572
        %v574 = vmul.f32 %v544, 1.442695
        %v575 = vpow.pop %v574
        %v576 = vmul.f32 %v545, 1.442695
        %v577 = vpow.pop %v576
        %v578 = vadd.f32 %v547, 1.0
        %v579 = vadd.f32 %v549, 1.0
        %v580 = vadd.f32 %v551, 1.0
        %v581 = vadd.f32 %v553, 1.0
        %v582 = vadd.f32 %v555, 1.0
        %v583 = vadd.f32 %v557, 1.0
        %v584 = vadd.f32 %v559, 1.0
        %v585 = vadd.f32 %v561, 1.0
        %v586 = vadd.f32 %v563, 1.0
        %v587 = vadd.f32 %v565, 1.0
        %v588 = vadd.f32 %v567, 1.0
        %v589 = vadd.f32 %v569, 1.0
        %v590 = vadd.f32 %v571, 1.0
        %v591 = vadd.f32 %v573, 1.0
        %v592 = vadd.f32 %v575, 1.0
        %v593 = vadd.f32 %v577, 1.0
        %v594 = vrcp.pop %v578
        %v595 = vrcp.pop %v579
        %v596 = vrcp.pop %v580
        %v597 = vrcp.pop %v581
        %v598 = vrcp.pop %v582
        %v599 = vrcp.pop %v583
        %v600 = vrcp.pop %v584
        %v601 = vrcp.pop %v585
        %v602 = vrcp.pop %v586
        %v603 = vrcp.pop %v587
        %v604 = vrcp.pop %v588
        %v605 = vrcp.pop %v589
        %v606 = vrcp.pop %v590
        %v607 = vrcp.pop %v591
        %v608 = vrcp.pop %v592
        %v609 = vrcp.pop %v593
        %v610 = vmul.f32 %v594, 6.0
        %v611 = vmul.f32 %v595, 6.0
        %v612 = vmul.f32 %v596, 6.0
        %v613 = vmul.f32 %v597, 6.0
        %v614 = vmul.f32 %v598, 6.0
        %v615 = vmul.f32 %v599, 6.0
        %v616 = vmul.f32 %v600, 6.0
        %v617 = vmul.f32 %v601, 6.0
        %v618 = vmul.f32 %v602, 6.0
        %v619 = vmul.f32 %v603, 6.0
        %v620 = vmul.f32 %v604, 6.0
        %v621 = vmul.f32 %v605, 6.0
        %v622 = vmul.f32 %v606, 6.0
        %v623 = vmul.f32 %v607, 6.0
        %v624 = vmul.f32 %v608, 6.0
        %v625 = vmul.f32 %v609, 6.0
        %v626 = vadd.f32 %v610, -3.0
        %v627 = vadd.f32 %v611, -3.0
        %v628 = vadd.f32 %v612, -3.0
        %v629 = vadd.f32 %v613, -3.0
        %v630 = vadd.f32 %v614, -3.0
        %v631 = vadd.f32 %v615, -3.0
        %v632 = vadd.f32 %v616, -3.0
        %v633 = vadd.f32 %v617, -3.0
        %v634 = vadd.f32 %v618, -3.0
        %v635 = vadd.f32 %v619, -3.0
        %v636 = vadd.f32 %v620, -3.0
        %v637 = vadd.f32 %v621, -3.0
        %v638 = vadd.f32 %v622, -3.0
        %v639 = vadd.f32 %v623, -3.0
        %v640 = vadd.f32 %v624, -3.0
        %v641 = vadd.f32 %v625, -3.0
        %vm642 = vcmask 7168
        %643 = vst.msk [vmem:[%s246] sm:$0xff] %vm642, %v626
        %644 = vst.msk [vmem:[%s246 + $0x8] sm:$0xff] %vm642, %v627
        %645 = vst.msk [vmem:[%s246 + $0x10] sm:$0xff] %vm642, %v628
        %646 = vst.msk [vmem:[%s246 + $0x18] sm:$0xff] %vm642, %v629
        %647 = vst.msk [vmem:[%s246 + $0x20] sm:$0xff] %vm642, %v630
        %648 = vst.msk [vmem:[%s246 + $0x28] sm:$0xff] %vm642, %v631
        %649 = vst.msk [vmem:[%s246 + $0x30] sm:$0xff] %vm642, %v632
        %650 = vst.msk [vmem:[%s246 + $0x38] sm:$0xff] %vm642, %v633
        %651 = vst.msk [vmem:[%s246 + $0x40] sm:$0xff] %vm642, %v634
        %652 = vst.msk [vmem:[%s246 + $0x48] sm:$0xff] %vm642, %v635
        %653 = vst.msk [vmem:[%s246 + $0x50] sm:$0xff] %vm642, %v636
        %654 = vst.msk [vmem:[%s246 + $0x58] sm:$0xff] %vm642, %v637
        %655 = vst.msk [vmem:[%s246 + $0x60] sm:$0xff] %vm642, %v638
        %656 = vst.msk [vmem:[%s246 + $0x68] sm:$0xff] %vm642, %v639
        %657 = vst.msk [vmem:[%s246 + $0x70] sm:$0xff] %vm642, %v640
        %658 = vst.msk [vmem:[%s246 + $0x78] sm:$0xff] %vm642, %v641
        %s659 = smul.u32 16, %s20
        %p660 = scmp.lt.s32.totalorder %s659, 31
        %s661 = scalar_select %p660, %s659, 31
        %s662 = smul.addr %s661, 8
        %s663 = scalar_lea.vmem %s5, %s662
        // Predicated region
        $region45: #{classifier_forward.1} parent=39 // pred_check
          %p664 = pneg %p148
        $region46: #{classifier_forward.1} parent=39 // pred_check_branch
          %666 = sbr.rel (%p664) target = $region48
        $region47: #{classifier_forward.1} parent=39 // pred_region
          %s667 = smul.u32 16, %s20
        $region48: #{classifier_forward.1} parent=39 // pred_fallthru
          _
      $region40: #{classifier_forward.1} parent=5 // pred_fallthru
        _
      %p668 = scmp.le.s32.totalorder 2, %s15
      // Predicated region
      $region49: #{classifier_forward.1} parent=5 // pred_check
        %p669 = pneg %p668
      $region50: #{classifier_forward.1} parent=5 // pred_check_branch
        %671 = sbr.rel (%p669) target = $region52
      $region51: #{classifier_forward.1} parent=5 // pred_region
        %s672 = ssub.s32 %s15, 2
        // Predicated region
        $region53: #{classifier_forward.1} parent=51 // pred_check
          %p673 = pneg %p154
        $region54: #{classifier_forward.1} parent=51 // pred_check_branch
          %675 = sbr.rel (%p673) target = $region56
        $region55: #{classifier_forward.1} parent=51 // pred_region
          %s676 = smul.u32 16, %s21
          %p677 = scmp.lt.s32.totalorder %s676, 31
          %s678 = scalar_select %p677, %s676, 31
          %s679 = smul.addr %s678, 8
          %s680 = scalar_lea.vmem %s5, %s679
        $region56: #{classifier_forward.1} parent=51 // pred_fallthru
          _
      $region52: #{classifier_forward.1} parent=5 // pred_fallthru
        _
    $region6: #{classifier_forward.1} parent=1 // loop_footer
      %s19 = sadd.s32 1, %s15
    $region7: #{classifier_forward.1} parent=1 // loop_footer_branch
      %14 = sbr.rel target = $region3
    $region8: #{classifier_forward.1} parent=1 // loop_exit
      _
    %681 = vsyncpa [#allocation4], 1
    %s682 = scalar_lea.sflag [#allocation4], 1
    %683 = vsyncpa %s682, 1

</llo_original>
